<compile_context>
chip_gen: v7x
topology: tpu7x:2x2x1
jax: 0.10.0
libtpu: 0.0.40
codegen_flags: <defaults>
</compile_context>

<pallas_src>
import functools

import jax
import jax.numpy as jnp
from jax import lax
from jax.experimental import pallas as pl
from jax.experimental.pallas import tpu as pltpu

_MXU_MIN_C = 64  # below this the 1x1 conv runs on the VPU instead of the MXU


def _compare_norm_kernel(x_ref, scale_ref, bias_ref,
                         w1_ref, w2_ref, w3_ref, cb_ref, o_ref,
                         *, use_mxu):
    # x_ref: (C, HW) for one batch element (batch dim squeezed by BlockSpec).
    x = x_ref[...]                                              # (C, HW) f32
    x2 = x * x                                                  # shared by var & ss

    # ---- InstanceNorm2d(affine=False), eps=1e-5, biased variance ----
    # Single-pass stats; rsqrt on the tiny (C, 1) vector goes to the EUP.
    mean = jnp.mean(x, axis=-1, keepdims=True)                  # (C, 1)
    var = jnp.maximum(jnp.mean(x2, axis=-1, keepdims=True) - mean * mean, 0.0)
    inv_std = lax.rsqrt(var + 1e-5)                             # (C, 1)
    z = (x - mean) * inv_std                                    # (C, HW)

    # ---- y = x * rsqrt(clamp(sum_c x^2, 1e-5)), then affine ----
    ss = jnp.sum(x2, axis=0, keepdims=True)                     # (1, HW)
    inv_norm = lax.rsqrt(jnp.maximum(ss, 1e-5))                 # (1, HW), EUP
    y = x * inv_norm                                            # (C, HW)
    y = y * scale_ref[...] + bias_ref[...]                      # (C, HW)

    # ---- 1x1 conv over concat([x, y, z], C) ----
    if use_mxu:
        out = (jnp.dot(w1_ref[...], x, preferred_element_type=jnp.float32)
               + jnp.dot(w2_ref[...], y, preferred_element_type=jnp.float32)
               + jnp.dot(w3_ref[...], z, preferred_element_type=jnp.float32)
               + cb_ref[...])                                   # (C, HW)
    else:
        # Small C: 3*C broadcast multiply-adds on the VPU; a (C,C)x(C,HW)
        # matmul at C=4 would use <0.1% of the MXU and only pay push/pop cost.
        w1 = w1_ref[...]                                        # (C, C)
        w2 = w2_ref[...]
        w3 = w3_ref[...]
        c_dim = x.shape[0]
        out = jnp.broadcast_to(cb_ref[...], x.shape)            # (C, HW)
        for c in range(c_dim):                                  # unrolled, static
            out = out + (w1[:, c:c + 1] * x[c:c + 1, :]
                         + w2[:, c:c + 1] * y[c:c + 1, :]
                         + w3[:, c:c + 1] * z[c:c + 1, :])

    # ---- LeakyReLU(0.2): max(out, 0.2*out) ----
    o_ref[...] = jnp.maximum(out, 0.2 * out).astype(o_ref.dtype)


def compare_norm2d(x, scale, bias, conv_w, conv_b):
    """x: (N, C, H, W) f32; scale/bias: (1, C, 1, 1); conv_w: (C, 3C, 1, 1); conv_b: (C,)."""
    N, C, H, W = x.shape
    HW = H * W

    xf = x.reshape(N, C, HW)
    scale2 = scale.reshape(C, 1)
    bias2 = bias.reshape(C, 1)
    w_full = conv_w.reshape(C, 3 * C)
    w1, w2, w3 = w_full[:, :C], w_full[:, C:2 * C], w_full[:, 2 * C:]
    cb = conv_b.reshape(C, 1)

    param_spec_c1 = pl.BlockSpec((C, 1), lambda n: (0, 0))
    param_spec_cc = pl.BlockSpec((C, C), lambda n: (0, 0))

    # Double-buffered (C, HW) x/out blocks + params + compiler scratch,
    # with headroom; avoids the 16/32 MiB default scoped-VMEM ceiling.
    block_bytes = C * HW * x.dtype.itemsize
    vmem_limit = int(min(100 * 1024 * 1024,
                         max(32 * 1024 * 1024, 10 * block_bytes)))

    kernel = functools.partial(_compare_norm_kernel,
                               use_mxu=(C >= _MXU_MIN_C))

    out = pl.pallas_call(
        kernel,
        out_shape=jax.ShapeDtypeStruct((N, C, HW), x.dtype),
        grid=(N,),
        in_specs=[
            pl.BlockSpec((None, C, HW), lambda n: (n, 0, 0)),   # x (batch squeezed)
            param_spec_c1,                                      # scale
            param_spec_c1,                                      # bias
            param_spec_cc,                                      # w1 (x branch)
            param_spec_cc,                                      # w2 (y branch)
            param_spec_cc,                                      # w3 (z branch)
            param_spec_c1,                                      # conv bias
        ],
        out_specs=pl.BlockSpec((None, C, HW), lambda n: (n, 0, 0)),
        compiler_params=pltpu.CompilerParams(
            dimension_semantics=("parallel",),
            vmem_limit_bytes=vmem_limit),
    )(xf, scale2, bias2, w1, w2, w3, cb)

    return out.reshape(N, C, H, W)


def _reference(x, scale, bias, conv_w, conv_b):
    """Pure-JAX reference mirroring the PyTorch forward."""
    mean = jnp.mean(x, axis=(2, 3), keepdims=True)
    var = jnp.mean(jnp.square(x - mean), axis=(2, 3), keepdims=True)
    z = (x - mean) / jnp.sqrt(var + 1e-5)
    ss = jnp.sum(x * x, axis=1, keepdims=True)
    y = x / jnp.sqrt(jnp.clip(ss, 1e-5, None))
    cat = jnp.concatenate([x, y * scale + bias, z], axis=1)     # (N, 3C, H, W)
    w = conv_w.reshape(conv_w.shape[0], conv_w.shape[1])        # (C, 3C)
    out = jnp.einsum('oc,nchw->nohw', w, cat) + conv_b.reshape(1, -1, 1, 1)
    return jnp.where(out >= 0, out, 0.2 * out)


if __name__ == "__main__":
    key = jax.random.PRNGKey(0)
    k_x, k_s, k_b, k_w, k_wb = jax.random.split(key, 5)

    N, dim, H, W = 2, 4, 16, 16
    x = jax.random.normal(k_x, (N, dim, H, W), dtype=jnp.float32)

    # Deterministic parameter init (shapes from the module's __init__).
    scale = 1.0 + jax.random.normal(k_s, (1, dim, 1, 1), dtype=jnp.float32)
    bias = jax.random.normal(k_b, (1, dim, 1, 1), dtype=jnp.float32)
    conv_w = 0.1 * jax.random.normal(k_w, (dim, 3 * dim, 1, 1), dtype=jnp.float32)
    conv_b = 0.1 * jax.random.normal(k_wb, (dim,), dtype=jnp.float32)

    out = compare_norm2d(x, scale, bias, conv_w, conv_b)
    out = jax.block_until_ready(out)

    ref = _reference(x, scale, bias, conv_w, conv_b)
    assert out.shape == (N, dim, H, W)
    assert jnp.max(jnp.abs(out - ref)) < 1e-4

    print("KERNEL_OK")
</pallas_src>

<mosaic_0001>
module attributes {stable_mosaic.version = 11 : i64} {
  func.func @_compare_norm_kernel(%arg0: i32, %arg1: memref<1x4x256xf32, #tpu.memory_space<vmem>>, %arg2: memref<4x1xf32, #tpu.memory_space<vmem>>, %arg3: memref<4x1xf32, #tpu.memory_space<vmem>>, %arg4: memref<4x4xf32, #tpu.memory_space<vmem>>, %arg5: memref<4x4xf32, #tpu.memory_space<vmem>>, %arg6: memref<4x4xf32, #tpu.memory_space<vmem>>, %arg7: memref<4x1xf32, #tpu.memory_space<vmem>>, %arg8: memref<1x4x256xf32, #tpu.memory_space<vmem>>) attributes {dimension_semantics = [#tpu.dimension_semantics<parallel>], iteration_bounds = array<i64: 2>, scalar_prefetch = 0 : i64, scratch_operands = 0 : i64, tpu.core_type = #tpu.core_type<tc>, window_params = [{transform_indices = @transform_0, window_bounds = array<i64: 1, 4, 256>}, {pipeline_mode = #tpu.pipeline_mode<synchronous>, transform_indices = @transform_1, window_bounds = array<i64: 4, 1>}, {pipeline_mode = #tpu.pipeline_mode<synchronous>, transform_indices = @transform_2, window_bounds = array<i64: 4, 1>}, {pipeline_mode = #tpu.pipeline_mode<synchronous>, transform_indices = @transform_3, window_bounds = array<i64: 4, 4>}, {pipeline_mode = #tpu.pipeline_mode<synchronous>, transform_indices = @transform_4, window_bounds = array<i64: 4, 4>}, {pipeline_mode = #tpu.pipeline_mode<synchronous>, transform_indices = @transform_5, window_bounds = array<i64: 4, 4>}, {pipeline_mode = #tpu.pipeline_mode<synchronous>, transform_indices = @transform_6, window_bounds = array<i64: 4, 1>}, {transform_indices = @transform_7, window_bounds = array<i64: 1, 4, 256>}]} {
    %c0 = arith.constant 0 : index
    %c0_0 = arith.constant 0 : index
    %c0_1 = arith.constant 0 : index
    %0 = vector.load %arg1[%c0, %c0_0, %c0_1] : memref<1x4x256xf32, #tpu.memory_space<vmem>>, vector<1x4x256xf32>
    %1 = vector.shape_cast %0 : vector<1x4x256xf32> to vector<4x256xf32>
    %2 = arith.mulf %1, %1 : vector<4x256xf32>
    %cst = arith.constant dense<0.000000e+00> : vector<4xf32>
    %3 = vector.multi_reduction <add>, %1, %cst [1] : vector<4x256xf32> to vector<4xf32>
    %4 = vector.shape_cast %3 : vector<4xf32> to vector<4x1xf32>
    %cst_2 = arith.constant 2.560000e+02 : f32
    %5 = vector.broadcast %cst_2 : f32 to vector<4x1xf32>
    %6 = arith.divf %4, %5 : vector<4x1xf32>
    %cst_3 = arith.constant dense<0.000000e+00> : vector<4xf32>
    %7 = vector.multi_reduction <add>, %2, %cst_3 [1] : vector<4x256xf32> to vector<4xf32>
    %8 = vector.shape_cast %7 : vector<4xf32> to vector<4x1xf32>
    %cst_4 = arith.constant 2.560000e+02 : f32
    %9 = vector.broadcast %cst_4 : f32 to vector<4x1xf32>
    %10 = arith.divf %8, %9 : vector<4x1xf32>
    %11 = arith.mulf %6, %6 : vector<4x1xf32>
    %12 = arith.subf %10, %11 : vector<4x1xf32>
    %cst_5 = arith.constant 0.000000e+00 : f32
    %13 = vector.broadcast %cst_5 : f32 to vector<4x1xf32>
    %14 = arith.maximumf %12, %13 : vector<4x1xf32>
    %cst_6 = arith.constant 9.99999974E-6 : f32
    %15 = vector.broadcast %cst_6 : f32 to vector<4x1xf32>
    %16 = arith.addf %14, %15 : vector<4x1xf32>
    %17 = math.rsqrt %16 : vector<4x1xf32>
    %18 = vector.broadcast %6 : vector<4x1xf32> to vector<4x256xf32>
    %19 = arith.subf %1, %18 : vector<4x256xf32>
    %20 = vector.broadcast %17 : vector<4x1xf32> to vector<4x256xf32>
    %21 = arith.mulf %19, %20 : vector<4x256xf32>
    %cst_7 = arith.constant dense<0.000000e+00> : vector<256xf32>
    %22 = vector.multi_reduction <add>, %2, %cst_7 [0] : vector<4x256xf32> to vector<256xf32>
    %23 = vector.shape_cast %22 : vector<256xf32> to vector<1x256xf32>
    %cst_8 = arith.constant 9.99999974E-6 : f32
    %24 = vector.broadcast %cst_8 : f32 to vector<1x256xf32>
    %25 = arith.maximumf %23, %24 : vector<1x256xf32>
    %26 = math.rsqrt %25 : vector<1x256xf32>
    %27 = vector.broadcast %26 : vector<1x256xf32> to vector<4x256xf32>
    %28 = arith.mulf %1, %27 : vector<4x256xf32>
    %c0_9 = arith.constant 0 : index
    %c0_10 = arith.constant 0 : index
    %29 = vector.load %arg2[%c0_9, %c0_10] : memref<4x1xf32, #tpu.memory_space<vmem>>, vector<4x1xf32>
    %30 = vector.broadcast %29 : vector<4x1xf32> to vector<4x256xf32>
    %31 = arith.mulf %28, %30 : vector<4x256xf32>
    %c0_11 = arith.constant 0 : index
    %c0_12 = arith.constant 0 : index
    %32 = vector.load %arg3[%c0_11, %c0_12] : memref<4x1xf32, #tpu.memory_space<vmem>>, vector<4x1xf32>
    %33 = vector.broadcast %32 : vector<4x1xf32> to vector<4x256xf32>
    %34 = arith.addf %31, %33 : vector<4x256xf32>
    %c0_13 = arith.constant 0 : index
    %c0_14 = arith.constant 0 : index
    %35 = vector.load %arg4[%c0_13, %c0_14] : memref<4x4xf32, #tpu.memory_space<vmem>>, vector<4x4xf32>
    %c0_15 = arith.constant 0 : index
    %c0_16 = arith.constant 0 : index
    %36 = vector.load %arg5[%c0_15, %c0_16] : memref<4x4xf32, #tpu.memory_space<vmem>>, vector<4x4xf32>
    %c0_17 = arith.constant 0 : index
    %c0_18 = arith.constant 0 : index
    %37 = vector.load %arg6[%c0_17, %c0_18] : memref<4x4xf32, #tpu.memory_space<vmem>>, vector<4x4xf32>
    %c0_19 = arith.constant 0 : index
    %c0_20 = arith.constant 0 : index
    %38 = vector.load %arg7[%c0_19, %c0_20] : memref<4x1xf32, #tpu.memory_space<vmem>>, vector<4x1xf32>
    %39 = vector.shape_cast %38 : vector<4x1xf32> to vector<4x1xf32>
    %40 = vector.broadcast %39 : vector<4x1xf32> to vector<4x256xf32>
    %41 = vector.extract_strided_slice %35 {offsets = [0, 0], sizes = [4, 1], strides = [1, 1]} : vector<4x4xf32> to vector<4x1xf32>
    %42 = vector.extract_strided_slice %1 {offsets = [0, 0], sizes = [1, 256], strides = [1, 1]} : vector<4x256xf32> to vector<1x256xf32>
    %43 = vector.broadcast %41 : vector<4x1xf32> to vector<4x256xf32>
    %44 = vector.broadcast %42 : vector<1x256xf32> to vector<4x256xf32>
    %45 = arith.mulf %43, %44 : vector<4x256xf32>
    %46 = vector.extract_strided_slice %36 {offsets = [0, 0], sizes = [4, 1], strides = [1, 1]} : vector<4x4xf32> to vector<4x1xf32>
    %47 = vector.extract_strided_slice %34 {offsets = [0, 0], sizes = [1, 256], strides = [1, 1]} : vector<4x256xf32> to vector<1x256xf32>
    %48 = vector.broadcast %46 : vector<4x1xf32> to vector<4x256xf32>
    %49 = vector.broadcast %47 : vector<1x256xf32> to vector<4x256xf32>
    %50 = arith.mulf %48, %49 : vector<4x256xf32>
    %51 = arith.addf %45, %50 : vector<4x256xf32>
    %52 = vector.extract_strided_slice %37 {offsets = [0, 0], sizes = [4, 1], strides = [1, 1]} : vector<4x4xf32> to vector<4x1xf32>
    %53 = vector.extract_strided_slice %21 {offsets = [0, 0], sizes = [1, 256], strides = [1, 1]} : vector<4x256xf32> to vector<1x256xf32>
    %54 = vector.broadcast %52 : vector<4x1xf32> to vector<4x256xf32>
    %55 = vector.broadcast %53 : vector<1x256xf32> to vector<4x256xf32>
    %56 = arith.mulf %54, %55 : vector<4x256xf32>
    %57 = arith.addf %51, %56 : vector<4x256xf32>
    %58 = arith.addf %40, %57 : vector<4x256xf32>
    %59 = vector.extract_strided_slice %35 {offsets = [0, 1], sizes = [4, 1], strides = [1, 1]} : vector<4x4xf32> to vector<4x1xf32>
    %60 = vector.extract_strided_slice %1 {offsets = [1, 0], sizes = [1, 256], strides = [1, 1]} : vector<4x256xf32> to vector<1x256xf32>
    %61 = vector.broadcast %59 : vector<4x1xf32> to vector<4x256xf32>
    %62 = vector.broadcast %60 : vector<1x256xf32> to vector<4x256xf32>
    %63 = arith.mulf %61, %62 : vector<4x256xf32>
    %64 = vector.extract_strided_slice %36 {offsets = [0, 1], sizes = [4, 1], strides = [1, 1]} : vector<4x4xf32> to vector<4x1xf32>
    %65 = vector.extract_strided_slice %34 {offsets = [1, 0], sizes = [1, 256], strides = [1, 1]} : vector<4x256xf32> to vector<1x256xf32>
    %66 = vector.broadcast %64 : vector<4x1xf32> to vector<4x256xf32>
    %67 = vector.broadcast %65 : vector<1x256xf32> to vector<4x256xf32>
    %68 = arith.mulf %66, %67 : vector<4x256xf32>
    %69 = arith.addf %63, %68 : vector<4x256xf32>
    %70 = vector.extract_strided_slice %37 {offsets = [0, 1], sizes = [4, 1], strides = [1, 1]} : vector<4x4xf32> to vector<4x1xf32>
    %71 = vector.extract_strided_slice %21 {offsets = [1, 0], sizes = [1, 256], strides = [1, 1]} : vector<4x256xf32> to vector<1x256xf32>
    %72 = vector.broadcast %70 : vector<4x1xf32> to vector<4x256xf32>
    %73 = vector.broadcast %71 : vector<1x256xf32> to vector<4x256xf32>
    %74 = arith.mulf %72, %73 : vector<4x256xf32>
    %75 = arith.addf %69, %74 : vector<4x256xf32>
    %76 = arith.addf %58, %75 : vector<4x256xf32>
    %77 = vector.extract_strided_slice %35 {offsets = [0, 2], sizes = [4, 1], strides = [1, 1]} : vector<4x4xf32> to vector<4x1xf32>
    %78 = vector.extract_strided_slice %1 {offsets = [2, 0], sizes = [1, 256], strides = [1, 1]} : vector<4x256xf32> to vector<1x256xf32>
    %79 = vector.broadcast %77 : vector<4x1xf32> to vector<4x256xf32>
    %80 = vector.broadcast %78 : vector<1x256xf32> to vector<4x256xf32>
    %81 = arith.mulf %79, %80 : vector<4x256xf32>
    %82 = vector.extract_strided_slice %36 {offsets = [0, 2], sizes = [4, 1], strides = [1, 1]} : vector<4x4xf32> to vector<4x1xf32>
    %83 = vector.extract_strided_slice %34 {offsets = [2, 0], sizes = [1, 256], strides = [1, 1]} : vector<4x256xf32> to vector<1x256xf32>
    %84 = vector.broadcast %82 : vector<4x1xf32> to vector<4x256xf32>
    %85 = vector.broadcast %83 : vector<1x256xf32> to vector<4x256xf32>
    %86 = arith.mulf %84, %85 : vector<4x256xf32>
    %87 = arith.addf %81, %86 : vector<4x256xf32>
    %88 = vector.extract_strided_slice %37 {offsets = [0, 2], sizes = [4, 1], strides = [1, 1]} : vector<4x4xf32> to vector<4x1xf32>
    %89 = vector.extract_strided_slice %21 {offsets = [2, 0], sizes = [1, 256], strides = [1, 1]} : vector<4x256xf32> to vector<1x256xf32>
    %90 = vector.broadcast %88 : vector<4x1xf32> to vector<4x256xf32>
    %91 = vector.broadcast %89 : vector<1x256xf32> to vector<4x256xf32>
    %92 = arith.mulf %90, %91 : vector<4x256xf32>
    %93 = arith.addf %87, %92 : vector<4x256xf32>
    %94 = arith.addf %76, %93 : vector<4x256xf32>
    %95 = vector.extract_strided_slice %35 {offsets = [0, 3], sizes = [4, 1], strides = [1, 1]} : vector<4x4xf32> to vector<4x1xf32>
    %96 = vector.extract_strided_slice %1 {offsets = [3, 0], sizes = [1, 256], strides = [1, 1]} : vector<4x256xf32> to vector<1x256xf32>
    %97 = vector.broadcast %95 : vector<4x1xf32> to vector<4x256xf32>
    %98 = vector.broadcast %96 : vector<1x256xf32> to vector<4x256xf32>
    %99 = arith.mulf %97, %98 : vector<4x256xf32>
    %100 = vector.extract_strided_slice %36 {offsets = [0, 3], sizes = [4, 1], strides = [1, 1]} : vector<4x4xf32> to vector<4x1xf32>
    %101 = vector.extract_strided_slice %34 {offsets = [3, 0], sizes = [1, 256], strides = [1, 1]} : vector<4x256xf32> to vector<1x256xf32>
    %102 = vector.broadcast %100 : vector<4x1xf32> to vector<4x256xf32>
    %103 = vector.broadcast %101 : vector<1x256xf32> to vector<4x256xf32>
    %104 = arith.mulf %102, %103 : vector<4x256xf32>
    %105 = arith.addf %99, %104 : vector<4x256xf32>
    %106 = vector.extract_strided_slice %37 {offsets = [0, 3], sizes = [4, 1], strides = [1, 1]} : vector<4x4xf32> to vector<4x1xf32>
    %107 = vector.extract_strided_slice %21 {offsets = [3, 0], sizes = [1, 256], strides = [1, 1]} : vector<4x256xf32> to vector<1x256xf32>
    %108 = vector.broadcast %106 : vector<4x1xf32> to vector<4x256xf32>
    %109 = vector.broadcast %107 : vector<1x256xf32> to vector<4x256xf32>
    %110 = arith.mulf %108, %109 : vector<4x256xf32>
    %111 = arith.addf %105, %110 : vector<4x256xf32>
    %112 = arith.addf %94, %111 : vector<4x256xf32>
    %cst_21 = arith.constant 2.000000e-01 : f32
    %113 = vector.broadcast %cst_21 : f32 to vector<4x256xf32>
    %114 = arith.mulf %113, %112 : vector<4x256xf32>
    %115 = arith.maximumf %112, %114 : vector<4x256xf32>
    %c0_22 = arith.constant 0 : index
    %c0_23 = arith.constant 0 : index
    %c0_24 = arith.constant 0 : index
    %116 = vector.load %arg8[%c0_22, %c0_23, %c0_24] : memref<1x4x256xf32, #tpu.memory_space<vmem>>, vector<1x4x256xf32>
    %117 = vector.shape_cast %116 : vector<1x4x256xf32> to vector<4x256xf32>
    %118 = vector.shape_cast %115 : vector<4x256xf32> to vector<1x4x256xf32>
    tpu.vector_store %arg8[%c0_22, %c0_23, %c0_24], %118 {strides = array<i32>} : memref<1x4x256xf32, #tpu.memory_space<vmem>>, vector<1x4x256xf32>,
    return
  }
  func.func @transform_0(%arg0: i32) -> (i32, i32, i32) {
    %c0_i32 = arith.constant 0 : i32
    %c0_i32_0 = arith.constant 0 : i32
    %c0_i32_1 = arith.constant 0 : i32
    return %arg0, %c0_i32, %c0_i32_0 : i32, i32, i32
  }
  func.func @transform_1(%arg0: i32) -> (i32, i32) {
    %c0_i32 = arith.constant 0 : i32
    %c0_i32_0 = arith.constant 0 : i32
    %c0_i32_1 = arith.constant 0 : i32
    return %c0_i32, %c0_i32_0 : i32, i32
  }
  func.func @transform_2(%arg0: i32) -> (i32, i32) {
    %c0_i32 = arith.constant 0 : i32
    %c0_i32_0 = arith.constant 0 : i32
    %c0_i32_1 = arith.constant 0 : i32
    return %c0_i32, %c0_i32_0 : i32, i32
  }
  func.func @transform_3(%arg0: i32) -> (i32, i32) {
    %c0_i32 = arith.constant 0 : i32
    %c0_i32_0 = arith.constant 0 : i32
    %c0_i32_1 = arith.constant 0 : i32
    return %c0_i32, %c0_i32_0 : i32, i32
  }
  func.func @transform_4(%arg0: i32) -> (i32, i32) {
    %c0_i32 = arith.constant 0 : i32
    %c0_i32_0 = arith.constant 0 : i32
    %c0_i32_1 = arith.constant 0 : i32
    return %c0_i32, %c0_i32_0 : i32, i32
  }
  func.func @transform_5(%arg0: i32) -> (i32, i32) {
    %c0_i32 = arith.constant 0 : i32
    %c0_i32_0 = arith.constant 0 : i32
    %c0_i32_1 = arith.constant 0 : i32
    return %c0_i32, %c0_i32_0 : i32, i32
  }
  func.func @transform_6(%arg0: i32) -> (i32, i32) {
    %c0_i32 = arith.constant 0 : i32
    %c0_i32_0 = arith.constant 0 : i32
    %c0_i32_1 = arith.constant 0 : i32
    return %c0_i32, %c0_i32_0 : i32, i32
  }
  func.func @transform_7(%arg0: i32) -> (i32, i32, i32) {
    %c0_i32 = arith.constant 0 : i32
    %c0_i32_0 = arith.constant 0 : i32
    %c0_i32_1 = arith.constant 0 : i32
    return %arg0, %c0_i32, %c0_i32_0 : i32, i32, i32
  }
}

</mosaic_0001>

<llo_original>
// kernel: tpu_custom_call.1
$region0: #{tpu_custom_call.1}
  #allocation0 [shape = 'u32[]', space=smem, size = 0x4, offset = 0x4, fixed_abs, tag = 'smem constant byte address 0x4 - core index']
  #allocation1 [shape = 'u32[144,128]{1,0:T(1,128)}', space=vmem, size = 0x12000, scoped, tag = 'internal scratch']
  %s0 = inlined_call_operand.hbm [shape: f32[2,4,256], index: 0, kind: input, shape index: {}]
  %s1 = inlined_call_operand.vmem [shape: f32[4,1], index: 1, kind: input, shape index: {}]
  %s2 = inlined_call_operand.vmem [shape: f32[4,1], index: 2, kind: input, shape index: {}]
  %s3 = inlined_call_operand.vmem [shape: f32[4,4], index: 3, kind: input, shape index: {}]
  %s4 = inlined_call_operand.vmem [shape: f32[4,4], index: 4, kind: input, shape index: {}]
  %s5 = inlined_call_operand.vmem [shape: f32[4,4], index: 5, kind: input, shape index: {}]
  %s6 = inlined_call_operand.vmem [shape: f32[4,1], index: 6, kind: input, shape index: {}]
  %s7 = inlined_call_operand.hbm [shape: f32[2,4,256], index: 7, kind: output, shape index: {}]
  %s8 = sld [smem:[#allocation0]]
  $region65: #{tpu_custom_call.1} parent=0
    _
  %s10 = ssub.s32 1, %s8
  %s11 = scalar_select 0, %s10, %s8
  $region1: #{tpu_custom_call.1} parent=0
    #allocation2 [shape = 'u8[8192]{0}', space=vmem, size = 0x2000, scoped, tag = 'input window, operand 0']
    #allocation3 [shape = 's32[2]{0}', space=sflag, size = 0x8, scoped, tag = 'scoped memory for tpu_custom_call.1']
    #allocation4 [shape = 's32[2]{0}', space=sflag, size = 0x8, scoped, tag = 'scoped memory for tpu_custom_call.1']
    #allocation5 [shape = 'u8[8192]{0}', space=vmem, size = 0x2000, scoped, tag = 'output window, operand 0']
    %12 = vsyncpa [#allocation3], 0
    %s13 = scalar_lea.sflag [#allocation3], 1
    %14 = vsyncpa %s13, 0
    %15 = vsyncpa [#allocation4], 0
    %s16 = scalar_lea.sflag [#allocation4], 1
    %17 = vsyncpa %s16, 0
    loop: start=0, step=1, limit=4
    $region2: #{tpu_custom_call.1} parent=1 // loop_pre_header
      _
    $region3: #{tpu_custom_call.1} parent=1 // loop_header
      %s19 = sphi 0, %s23
      %p20 = scmp.ge.s32.totalorder %s19, 4
      %s29 = sphi 0, %s31
      %s32 = sphi 0, %s29
      %s33 = sphi 0, %s32
      %s49 = sphi 0, %s33
      %s53 = sphi 0, %s53
      %s55 = sphi 0, %s53
      %s56 = sphi 0, %s55
      %s70 = sphi 0, %s56
      %s74 = sphi 0, %s74
      %s76 = sphi 0, %s74
      %s77 = sphi 0, %s76
      %s91 = sphi 0, %s77
      %s95 = sphi 0, %s95
      %s97 = sphi 0, %s95
      %s98 = sphi 0, %s97
      %s112 = sphi 0, %s98
      %s116 = sphi 0, %s116
      %s118 = sphi 0, %s116
      %s119 = sphi 0, %s118
      %s133 = sphi 0, %s119
      %s137 = sphi 0, %s137
      %s139 = sphi 0, %s137
      %s140 = sphi 0, %s139
      %s154 = sphi 0, %s140
      %s158 = sphi 0, %s158
      %s160 = sphi 0, %s158
      %s161 = sphi 0, %s160
      %s175 = sphi 0, %s161
      %s181 = sphi 0, %s183
      %s184 = sphi 0, %s181
      %s185 = sphi 0, %s184
      %s201 = sphi 0, %s185
    $region4: #{tpu_custom_call.1} parent=1 // loop_header_branch
      %22 = sbr.rel (%p20) target = $region8
    $region5: #{tpu_custom_call.1} parent=1 // loop_body
      %s24 = ssub.s32 %s19, 1
      %s25 = ssub.s32 %s19, 2
      %s26 = sadd.s32 %s19, 1
      %s27 = ssub.s32 %s19, %s26
      %p28 = scmp.eq.s32.totalorder %s27, 0
      %s30 = sadd.s32 %s29, 1
      %s31 = scalar_select %p28, %s29, %s30
      %p34 = pneg %p28
      %p35 = scmp.eq.s32.totalorder %s19, 1
      %p36 = por %p34, %p35
      %p37 = scmp.ne.s32.totalorder %s29, %s32
      %p38 = scmp.eq.s32.totalorder %s19, 0
      %p39 = por %p37, %p38
      %p40 = scmp.ne.s32.totalorder %s29, %s32
      %p41 = scmp.eq.s32.totalorder %s24, 1
      %p42 = por %p40, %p41
      %p43 = scmp.ne.s32.totalorder %s32, %s33
      %p44 = scmp.eq.s32.totalorder %s24, 0
      %p45 = por %p43, %p44
      %p46 = scmp.ne.s32.totalorder %s32, %s33
      %p47 = scmp.eq.s32.totalorder %s25, 1
      %p48 = por %p46, %p47
      %p50 = scmp.ne.s32.totalorder %s33, %s49
      %p51 = scmp.eq.s32.totalorder %s25, 0
      %p52 = por %p50, %p51
      %s54 = sadd.s32 %s53, 1
      %p57 = scmp.eq.s32.totalorder %s19, 1
      %p58 = scmp.ne.s32.totalorder %s53, %s55
      %p59 = scmp.eq.s32.totalorder %s19, 0
      %p60 = por %p58, %p59
      %p61 = scmp.ne.s32.totalorder %s53, %s55
      %p62 = scmp.eq.s32.totalorder %s24, 1
      %p63 = por %p61, %p62
      %p64 = scmp.ne.s32.totalorder %s55, %s56
      %p65 = scmp.eq.s32.totalorder %s24, 0
      %p66 = por %p64, %p65
      %p67 = scmp.ne.s32.totalorder %s55, %s56
      %p68 = scmp.eq.s32.totalorder %s25, 1
      %p69 = por %p67, %p68
      %p71 = scmp.ne.s32.totalorder %s56, %s70
      %p72 = scmp.eq.s32.totalorder %s25, 0
      %p73 = por %p71, %p72
      %s75 = sadd.s32 %s74, 1
      %p78 = scmp.eq.s32.totalorder %s19, 1
      %p79 = scmp.ne.s32.totalorder %s74, %s76
      %p80 = scmp.eq.s32.totalorder %s19, 0
      %p81 = por %p79, %p80
      %p82 = scmp.ne.s32.totalorder %s74, %s76
      %p83 = scmp.eq.s32.totalorder %s24, 1
      %p84 = por %p82, %p83
      %p85 = scmp.ne.s32.totalorder %s76, %s77
      %p86 = scmp.eq.s32.totalorder %s24, 0
      %p87 = por %p85, %p86
      %p88 = scmp.ne.s32.totalorder %s76, %s77
      %p89 = scmp.eq.s32.totalorder %s25, 1
      %p90 = por %p88, %p89
      %p92 = scmp.ne.s32.totalorder %s77, %s91
      %p93 = scmp.eq.s32.totalorder %s25, 0
      %p94 = por %p92, %p93
      %s96 = sadd.s32 %s95, 1
      %p99 = scmp.eq.s32.totalorder %s19, 1
      %p100 = scmp.ne.s32.totalorder %s95, %s97
      %p101 = scmp.eq.s32.totalorder %s19, 0
      %p102 = por %p100, %p101
      %p103 = scmp.ne.s32.totalorder %s95, %s97
      %p104 = scmp.eq.s32.totalorder %s24, 1
      %p105 = por %p103, %p104
      %p106 = scmp.ne.s32.totalorder %s97, %s98
      %p107 = scmp.eq.s32.totalorder %s24, 0
      %p108 = por %p106, %p107
      %p109 = scmp.ne.s32.totalorder %s97, %s98
      %p110 = scmp.eq.s32.totalorder %s25, 1
      %p111 = por %p109, %p110
      %p113 = scmp.ne.s32.totalorder %s98, %s112
      %p114 = scmp.eq.s32.totalorder %s25, 0
      %p115 = por %p113, %p114
      %s117 = sadd.s32 %s116, 1
      %p120 = scmp.eq.s32.totalorder %s19, 1
      %p121 = scmp.ne.s32.totalorder %s116, %s118
      %p122 = scmp.eq.s32.totalorder %s19, 0
      %p123 = por %p121, %p122
      %p124 = scmp.ne.s32.totalorder %s116, %s118
      %p125 = scmp.eq.s32.totalorder %s24, 1
      %p126 = por %p124, %p125
      %p127 = scmp.ne.s32.totalorder %s118, %s119
      %p128 = scmp.eq.s32.totalorder %s24, 0
      %p129 = por %p127, %p128
      %p130 = scmp.ne.s32.totalorder %s118, %s119
      %p131 = scmp.eq.s32.totalorder %s25, 1
      %p132 = por %p130, %p131
      %p134 = scmp.ne.s32.totalorder %s119, %s133
      %p135 = scmp.eq.s32.totalorder %s25, 0
      %p136 = por %p134, %p135
      %s138 = sadd.s32 %s137, 1
      %p141 = scmp.eq.s32.totalorder %s19, 1
      %p142 = scmp.ne.s32.totalorder %s137, %s139
      %p143 = scmp.eq.s32.totalorder %s19, 0
      %p144 = por %p142, %p143
      %p145 = scmp.ne.s32.totalorder %s137, %s139
      %p146 = scmp.eq.s32.totalorder %s24, 1
      %p147 = por %p145, %p146
      %p148 = scmp.ne.s32.totalorder %s139, %s140
      %p149 = scmp.eq.s32.totalorder %s24, 0
      %p150 = por %p148, %p149
      %p151 = scmp.ne.s32.totalorder %s139, %s140
      %p152 = scmp.eq.s32.totalorder %s25, 1
      %p153 = por %p151, %p152
      %p155 = scmp.ne.s32.totalorder %s140, %s154
      %p156 = scmp.eq.s32.totalorder %s25, 0
      %p157 = por %p155, %p156
      %s159 = sadd.s32 %s158, 1
      %p162 = scmp.eq.s32.totalorder %s19, 1
      %p163 = scmp.ne.s32.totalorder %s158, %s160
      %p164 = scmp.eq.s32.totalorder %s19, 0
      %p165 = por %p163, %p164
      %p166 = scmp.ne.s32.totalorder %s158, %s160
      %p167 = scmp.eq.s32.totalorder %s24, 1
      %p168 = por %p166, %p167
      %p169 = scmp.ne.s32.totalorder %s160, %s161
      %p170 = scmp.eq.s32.totalorder %s24, 0
      %p171 = por %p169, %p170
      %p172 = scmp.ne.s32.totalorder %s160, %s161
      %p173 = scmp.eq.s32.totalorder %s25, 1
      %p174 = por %p172, %p173
      %p176 = scmp.ne.s32.totalorder %s161, %s175
      %p177 = scmp.eq.s32.totalorder %s25, 0
      %p178 = por %p176, %p177
      %s179 = ssub.s32 %s19, %s26
      %p180 = scmp.eq.s32.totalorder %s179, 0
      %s182 = sadd.s32 %s181, 1
      %s183 = scalar_select %p180, %s181, %s182
      %p186 = pneg %p180
      %p187 = scmp.eq.s32.totalorder %s19, 1
      %p188 = por %p186, %p187
      %p189 = scmp.ne.s32.totalorder %s181, %s184
      %p190 = scmp.eq.s32.totalorder %s19, 0
      %p191 = por %p189, %p190
      %p192 = scmp.ne.s32.totalorder %s181, %s184
      %p193 = scmp.eq.s32.totalorder %s24, 1
      %p194 = por %p192, %p193
      %p195 = scmp.ne.s32.totalorder %s184, %s185
      %p196 = scmp.eq.s32.totalorder %s24, 0
      %p197 = por %p195, %p196
      %p198 = scmp.ne.s32.totalorder %s184, %s185
      %p199 = scmp.eq.s32.totalorder %s25, 1
      %p200 = por %p198, %p199
      %p202 = scmp.ne.s32.totalorder %s185, %s201
      %p203 = scmp.eq.s32.totalorder %s25, 0
      %p204 = por %p202, %p203
      %p205 = scmp.le.s32.totalorder 1, %s19
      %p206 = scmp.lt.s32.totalorder %s19, 3
      %p207 = pnand %p205, %p206
      %p208 = pneg %p207
      // Predicated region
      $region9: #{tpu_custom_call.1} parent=5 // pred_check
        _
      $region10: #{tpu_custom_call.1} parent=5 // pred_check_branch
        %210 = sbr.rel (%p207) target = $region12
      $region11: #{tpu_custom_call.1} parent=5 // pred_region
        %s211 = ssub.s32 %s19, 1
        // Predicated region
        $region13: #{tpu_custom_call.1} parent=11 // pred_check
          %p212 = pneg %p66
        $region14: #{tpu_custom_call.1} parent=11 // pred_check_branch
          %214 = sbr.rel (%p212) target = $region16
        $region15: #{tpu_custom_call.1} parent=11 // pred_region
          _
        $region16: #{tpu_custom_call.1} parent=11 // pred_fallthru
          _
        // Predicated region
        $region17: #{tpu_custom_call.1} parent=11 // pred_check
          %p215 = pneg %p87
        $region18: #{tpu_custom_call.1} parent=11 // pred_check_branch
          %217 = sbr.rel (%p215) target = $region20
        $region19: #{tpu_custom_call.1} parent=11 // pred_region
          _
        $region20: #{tpu_custom_call.1} parent=11 // pred_fallthru
          _
        // Predicated region
        $region21: #{tpu_custom_call.1} parent=11 // pred_check
          %p218 = pneg %p108
        $region22: #{tpu_custom_call.1} parent=11 // pred_check_branch
          %220 = sbr.rel (%p218) target = $region24
        $region23: #{tpu_custom_call.1} parent=11 // pred_region
          _
        $region24: #{tpu_custom_call.1} parent=11 // pred_fallthru
          _
        // Predicated region
        $region25: #{tpu_custom_call.1} parent=11 // pred_check
          %p221 = pneg %p129
        $region26: #{tpu_custom_call.1} parent=11 // pred_check_branch
          %223 = sbr.rel (%p221) target = $region28
        $region27: #{tpu_custom_call.1} parent=11 // pred_region
          _
        $region28: #{tpu_custom_call.1} parent=11 // pred_fallthru
          _
        // Predicated region
        $region29: #{tpu_custom_call.1} parent=11 // pred_check
          %p224 = pneg %p150
        $region30: #{tpu_custom_call.1} parent=11 // pred_check_branch
          %226 = sbr.rel (%p224) target = $region32
        $region31: #{tpu_custom_call.1} parent=11 // pred_region
          _
        $region32: #{tpu_custom_call.1} parent=11 // pred_fallthru
          _
        // Predicated region
        $region33: #{tpu_custom_call.1} parent=11 // pred_check
          %p227 = pneg %p171
        $region34: #{tpu_custom_call.1} parent=11 // pred_check_branch
          %229 = sbr.rel (%p227) target = $region36
        $region35: #{tpu_custom_call.1} parent=11 // pred_region
          _
        $region36: #{tpu_custom_call.1} parent=11 // pred_fallthru
          _
      $region12: #{tpu_custom_call.1} parent=5 // pred_fallthru
        _
      %p230 = scmp.lt.s32.totalorder %s19, 2
      // Predicated region
      $region37: #{tpu_custom_call.1} parent=5 // pred_check
        %p231 = pneg %p230
      $region38: #{tpu_custom_call.1} parent=5 // pred_check_branch
        %233 = sbr.rel (%p231) target = $region40
      $region39: #{tpu_custom_call.1} parent=5 // pred_region
        // Predicated region
        $region41: #{tpu_custom_call.1} parent=39 // pred_check
          %p234 = pneg %p39
        $region42: #{tpu_custom_call.1} parent=39 // pred_check_branch
          %236 = sbr.rel (%p234) target = $region44
        $region43: #{tpu_custom_call.1} parent=39 // pred_region
          %s237 = sand.u32 %s29, 1
          %s238 = scalar_lea.sflag [#allocation3], %s237
          %s239 = sand.u32 %s29, 1
          %s240 = smul.addr %s239, 8
          %s241 = scalar_lea.vmem [#allocation2], %s240
          %s243 = ssub.s32 128, 128
          %244 = vsyncadd %s238, %s243
          %s245 = smul.addr %s19, 2
          %s246 = smul.addr %s245, 64
          %s247 = scalar_lea.hbm %s0, %s246
          %s249 = sshll.u32 %s241, 4
          %s250 = int_to_ptr.vmem [resolvable:$true] %s249
          %252 = dma.hbm_to_vmem [thread:$0]  %s247, 128, %s250, %s238
        $region44: #{tpu_custom_call.1} parent=39 // pred_fallthru
          _
      $region40: #{tpu_custom_call.1} parent=5 // pred_fallthru
        _
      %p253 = scmp.le.s32.totalorder 1, %s19
      %p254 = scmp.lt.s32.totalorder %s19, 3
      %p255 = pnand %p253, %p254
      %p256 = pneg %p255
      // Predicated region
      $region45: #{tpu_custom_call.1} parent=5 // pred_check
        _
      $region46: #{tpu_custom_call.1} parent=5 // pred_check_branch
        %258 = sbr.rel (%p255) target = $region48
      $region47: #{tpu_custom_call.1} parent=5 // pred_region
        %s259 = ssub.s32 %s19, 1
        %s260 = sand.u32 %s32, 1
        %s261 = scalar_lea.sflag [#allocation3], %s260
        %s262 = sand.u32 %s32, 1
        %s263 = smul.addr %s262, 8
        %s264 = scalar_lea.vmem [#allocation2], %s263
        // Predicated region
        $region49: #{tpu_custom_call.1} parent=47 // pred_check
          %p265 = pneg %p45
        $region50: #{tpu_custom_call.1} parent=47 // pred_check_branch
          %267 = sbr.rel (%p265) target = $region52
        $region51: #{tpu_custom_call.1} parent=47 // pred_region
          %268 = dma.done %s261, 128
        $region52: #{tpu_custom_call.1} parent=47 // pred_fallthru
          _
        %s269 = sand.u32 %s32, 1
        %s270 = scalar_lea.sflag [#allocation3], %s269
        %s271 = sand.u32 %s32, 1
        %s272 = smul.addr %s271, 8
        %s273 = scalar_lea.vmem [#allocation2], %s272
        %p274 = pneg %p45
        %p275 = pneg %p42
        %p276 = pneg %p66
        %p277 = pneg %p63
        %p278 = pneg %p87
        %p279 = pneg %p84
        %p280 = pneg %p108
        %p281 = pneg %p105
        %p282 = pneg %p129
        %p283 = pneg %p126
        %p284 = pneg %p150
        %p285 = pneg %p147
        %p286 = pneg %p171
        %p287 = pneg %p168
        %p288 = pneg %p197
        %p289 = pneg %p194
        %s290 = sand.u32 %s184, 1
        %s291 = scalar_lea.sflag [#allocation4], %s290
        %s292 = sand.u32 %s184, 1
        %s293 = smul.addr %s292, 8
        %s294 = scalar_lea.vmem [#allocation5], %s293
        %v295 = vld [vmem:[%s264] sm:$0xff]
        %v296 = vmul.f32 %v295, %v295
        %v298 = vcombine.high %v295, %v295
        %vm300 = vcmask 1043456
        %v301 = vsel %vm300, %v295, 0.0
        %v302 = vsel %vm300, %v298, 0.0
        %v303 = vadd.f32 %v301, %v302
        %304 = vadd.xlane.f32.xlu0 %v303
        %v305 = vpop.xlane.xlu0 %304
        %v306 = vrcp.pop 256.0
        %v307 = vmul.f32 %v305, %v306
        %v309 = vcombine.high %v296, %v296
        %v311 = vsel %vm300, %v296, 0.0
        %v312 = vsel %vm300, %v309, 0.0
        %v313 = vadd.f32 %v311, %v312
        %314 = vadd.xlane.f32.xlu0 %v313
        %v315 = vpop.xlane.xlu0 %314
        %v316 = vmul.f32 %v315, %v306
        %v317 = vmul.f32 %v307, %v307
        %v318 = vsub.f32 %v316, %v317
        %v319 = vmax.f32 %v318, 0.0
        %v320 = vadd.f32 %v319, 1e-05
        %v321 = vrsqrt.pop %v320
        %v324 = vunpack.c.l.s4 839922192
        %v325 = vunpack.c.0.s8 %v324
        %v326 = vlaneseq
        %v327 = vshrl.u32 %v326, 7
        %v328 = vsub.s32 %v325, %v327
        %v329 = vrot.slane %v307, %v328
        %v331 = vsub.f32 %v295, %v329
        %v334 = vunpack.c.l.s4 839922192
        %v335 = vunpack.c.0.s8 %v334
        %v336 = vlaneseq
        %v337 = vshrl.u32 %v336, 7
        %v338 = vsub.s32 %v335, %v337
        %v339 = vrot.slane %v321, %v338
        %v341 = vmul.f32 %v331, %v339
        %v342 = vrot.slane %v311, 4
        %v343 = vadd.f32 %v311, %v342
        %v344 = vrot.slane %v343, 2
        %v345 = vadd.f32 %v343, %v344
        %v346 = vrot.slane %v345, 1
        %v347 = vadd.f32 %v345, %v346
        %v348 = vrot.slane %v312, 4
        %v349 = vadd.f32 %v312, %v348
        %v350 = vrot.slane %v349, 2
        %v351 = vadd.f32 %v349, %v350
        %v352 = vrot.slane %v351, 1
        %v353 = vadd.f32 %v351, %v352
        %v354 = vmax.f32 %v347, 1e-05
        %v355 = vmax.f32 %v353, 1e-05
        %v356 = vrsqrt.pop %v354
        %v357 = vrsqrt.pop %v355
        %v360 = vcombine.low %v356, %v357
        %v362 = vmul.f32 %v295, %v360
        %v363 = vld [vmem:[%s1] sm:$0xf]
        %365 = vset.pattern.permute.xlu0 0
        %366 = vperm.xlu0 %365, %v363
        %v367 = vpop.permute.xlu0 %366
        %v369 = vunpack.c.l.s4 839922192
        %v370 = vunpack.c.0.s8 %v369
        %v371 = vlaneseq
        %v372 = vshrl.u32 %v371, 7
        %v373 = vsub.s32 %v370, %v372
        %v374 = vrot.slane %v367, %v373
        %v376 = vmul.f32 %v362, %v374
        %v377 = vld [vmem:[%s2] sm:$0xf]
        %379 = vset.pattern.permute.xlu0 0
        %380 = vperm.xlu0 %379, %v377
        %v381 = vpop.permute.xlu0 %380
        %v383 = vunpack.c.l.s4 839922192
        %v384 = vunpack.c.0.s8 %v383
        %v385 = vlaneseq
        %v386 = vshrl.u32 %v385, 7
        %v387 = vsub.s32 %v384, %v386
        %v388 = vrot.slane %v381, %v387
        %v390 = vadd.f32 %v376, %v388
        %v391 = vld [vmem:[%s3] sm:$0xf]
        %v392 = vld [vmem:[%s4] sm:$0xf]
        %v393 = vld [vmem:[%s5] sm:$0xf]
        %v394 = vld [vmem:[%s6] sm:$0xf]
        %396 = vset.pattern.permute.xlu0 0
        %397 = vperm.xlu0 %396, %v394
        %v398 = vpop.permute.xlu0 %397
        %401 = vset.pattern.permute.xlu0 0
        %402 = vperm.xlu0 %401, %v391
        %v403 = vpop.permute.xlu0 %402
        %v405 = vlaneseq
        %v406 = vshrl.u32 %v405, 7
        %v407 = vsub.s32 0, %v406
        %v408 = vrot.slane %v295, %v407
        %v409 = vlaneseq
        %v410 = vshrl.u32 %v409, 7
        %v411 = vsub.s32 4, %v410
        %v412 = vrot.slane %v295, %v411
        %v415 = vlaneseq
        %v416 = vshrl.u32 %v415, 7
        %v417 = vsub.s32 0, %v416
        %v418 = vrot.slane %v408, %v417
        %v419 = vlaneseq
        %v420 = vshrl.u32 %v419, 7
        %v421 = vsub.s32 0, %v420
        %v422 = vrot.slane %v412, %v421
        %v423 = vmul.f32 %v403, %v418
        %v424 = vmul.f32 %v403, %v422
        %426 = vset.pattern.permute.xlu0 0
        %427 = vperm.xlu0 %426, %v392
        %v428 = vpop.permute.xlu0 %427
        %v431 = vlaneseq
        %v432 = vshrl.u32 %v431, 7
        %v433 = vsub.s32 0, %v432
        %v434 = vrot.slane %v390, %v433
        %v435 = vlaneseq
        %v436 = vshrl.u32 %v435, 7
        %v437 = vsub.s32 4, %v436
        %v438 = vrot.slane %v390, %v437
        %v441 = vlaneseq
        %v442 = vshrl.u32 %v441, 7
        %v443 = vsub.s32 0, %v442
        %v444 = vrot.slane %v434, %v443
        %v445 = vlaneseq
        %v446 = vshrl.u32 %v445, 7
        %v447 = vsub.s32 0, %v446
        %v448 = vrot.slane %v438, %v447
        %v449 = vmul.f32 %v428, %v444
        %v450 = vmul.f32 %v428, %v448
        %v451 = vadd.f32 %v423, %v449
        %v452 = vadd.f32 %v424, %v450
        %454 = vset.pattern.permute.xlu0 0
        %455 = vperm.xlu0 %454, %v393
        %v456 = vpop.permute.xlu0 %455
        %v459 = vlaneseq
        %v460 = vshrl.u32 %v459, 7
        %v461 = vsub.s32 0, %v460
        %v462 = vrot.slane %v341, %v461
        %v463 = vlaneseq
        %v464 = vshrl.u32 %v463, 7
        %v465 = vsub.s32 4, %v464
        %v466 = vrot.slane %v341, %v465
        %v469 = vlaneseq
        %v470 = vshrl.u32 %v469, 7
        %v471 = vsub.s32 0, %v470
        %v472 = vrot.slane %v462, %v471
        %v473 = vlaneseq
        %v474 = vshrl.u32 %v473, 7
        %v475 = vsub.s32 0, %v474
        %v476 = vrot.slane %v466, %v475
        %v477 = vmul.f32 %v456, %v472
        %v478 = vmul.f32 %v456, %v476
        %v479 = vadd.f32 %v451, %v477
        %v480 = vadd.f32 %v452, %v478
        %v481 = vadd.f32 %v398, %v479
        %v482 = vadd.f32 %v398, %v480
        %483 = vset.pattern.permute.xlu0 1
        %484 = vperm.xlu0 %483, %v391
        %v485 = vpop.permute.xlu0 %484
        %v487 = vlaneseq
        %v488 = vshrl.u32 %v487, 7
        %v489 = vsub.s32 1, %v488
        %v490 = vrot.slane %v295, %v489
        %v491 = vlaneseq
        %v492 = vshrl.u32 %v491, 7
        %v493 = vsub.s32 5, %v492
        %v494 = vrot.slane %v295, %v493
        %v497 = vlaneseq
        %v498 = vshrl.u32 %v497, 7
        %v499 = vsub.s32 1, %v498
        %v500 = vrot.slane %v490, %v499
        %v501 = vlaneseq
        %v502 = vshrl.u32 %v501, 7
        %v503 = vsub.s32 1, %v502
        %v504 = vrot.slane %v494, %v503
        %v505 = vmul.f32 %v485, %v500
        %v506 = vmul.f32 %v485, %v504
        %507 = vset.pattern.permute.xlu0 1
        %508 = vperm.xlu0 %507, %v392
        %v509 = vpop.permute.xlu0 %508
        %v511 = vlaneseq
        %v512 = vshrl.u32 %v511, 7
        %v513 = vsub.s32 1, %v512
        %v514 = vrot.slane %v390, %v513
        %v515 = vlaneseq
        %v516 = vshrl.u32 %v515, 7
        %v517 = vsub.s32 5, %v516
        %v518 = vrot.slane %v390, %v517
        %v521 = vlaneseq
        %v522 = vshrl.u32 %v521, 7
        %v523 = vsub.s32 1, %v522
        %v524 = vrot.slane %v514, %v523
        %v525 = vlaneseq
        %v526 = vshrl.u32 %v525, 7
        %v527 = vsub.s32 1, %v526
        %v528 = vrot.slane %v518, %v527
        %v529 = vmul.f32 %v509, %v524
        %v530 = vmul.f32 %v509, %v528
        %v531 = vadd.f32 %v505, %v529
        %v532 = vadd.f32 %v506, %v530
        %533 = vset.pattern.permute.xlu0 1
        %534 = vperm.xlu0 %533, %v393
        %v535 = vpop.permute.xlu0 %534
        %v537 = vlaneseq
        %v538 = vshrl.u32 %v537, 7
        %v539 = vsub.s32 1, %v538
        %v540 = vrot.slane %v341, %v539
        %v541 = vlaneseq
        %v542 = vshrl.u32 %v541, 7
        %v543 = vsub.s32 5, %v542
        %v544 = vrot.slane %v341, %v543
        %v547 = vlaneseq
        %v548 = vshrl.u32 %v547, 7
        %v549 = vsub.s32 1, %v548
        %v550 = vrot.slane %v540, %v549
        %v551 = vlaneseq
        %v552 = vshrl.u32 %v551, 7
        %v553 = vsub.s32 1, %v552
        %v554 = vrot.slane %v544, %v553
        %v555 = vmul.f32 %v535, %v550
        %v556 = vmul.f32 %v535, %v554
        %v557 = vadd.f32 %v531, %v555
        %v558 = vadd.f32 %v532, %v556
        %v559 = vadd.f32 %v481, %v557
        %v560 = vadd.f32 %v482, %v558
        %561 = vset.pattern.permute.xlu0 2
        %562 = vperm.xlu0 %561, %v391
        %v563 = vpop.permute.xlu0 %562
        %v565 = vlaneseq
        %v566 = vshrl.u32 %v565, 7
        %v567 = vsub.s32 2, %v566
        %v568 = vrot.slane %v295, %v567
        %v569 = vlaneseq
        %v570 = vshrl.u32 %v569, 7
        %v571 = vsub.s32 6, %v570
        %v572 = vrot.slane %v295, %v571
        %v575 = vlaneseq
        %v576 = vshrl.u32 %v575, 7
        %v577 = vsub.s32 2, %v576
        %v578 = vrot.slane %v568, %v577
        %v579 = vlaneseq
        %v580 = vshrl.u32 %v579, 7
        %v581 = vsub.s32 2, %v580
        %v582 = vrot.slane %v572, %v581
        %v583 = vmul.f32 %v563, %v578
        %v584 = vmul.f32 %v563, %v582
        %585 = vset.pattern.permute.xlu0 2
        %586 = vperm.xlu0 %585, %v392
        %v587 = vpop.permute.xlu0 %586
        %v589 = vlaneseq
        %v590 = vshrl.u32 %v589, 7
        %v591 = vsub.s32 2, %v590
        %v592 = vrot.slane %v390, %v591
        %v593 = vlaneseq
        %v594 = vshrl.u32 %v593, 7
        %v595 = vsub.s32 6, %v594
        %v596 = vrot.slane %v390, %v595
        %v599 = vlaneseq
        %v600 = vshrl.u32 %v599, 7
        %v601 = vsub.s32 2, %v600
        %v602 = vrot.slane %v592, %v601
        %v603 = vlaneseq
        %v604 = vshrl.u32 %v603, 7
        %v605 = vsub.s32 2, %v604
        %v606 = vrot.slane %v596, %v605
        %v607 = vmul.f32 %v587, %v602
        %v608 = vmul.f32 %v587, %v606
        %v609 = vadd.f32 %v583, %v607
        %v610 = vadd.f32 %v584, %v608
        %611 = vset.pattern.permute.xlu0 2
        %612 = vperm.xlu0 %611, %v393
        %v613 = vpop.permute.xlu0 %612
        %v615 = vlaneseq
        %v616 = vshrl.u32 %v615, 7
        %v617 = vsub.s32 2, %v616
        %v618 = vrot.slane %v341, %v617
        %v619 = vlaneseq
        %v620 = vshrl.u32 %v619, 7
        %v621 = vsub.s32 6, %v620
        %v622 = vrot.slane %v341, %v621
        %v625 = vlaneseq
        %v626 = vshrl.u32 %v625, 7
        %v627 = vsub.s32 2, %v626
        %v628 = vrot.slane %v618, %v627
        %v629 = vlaneseq
        %v630 = vshrl.u32 %v629, 7
        %v631 = vsub.s32 2, %v630
        %v632 = vrot.slane %v622, %v631
        %v633 = vmul.f32 %v613, %v628
        %v634 = vmul.f32 %v613, %v632
        %v635 = vadd.f32 %v609, %v633
        %v636 = vadd.f32 %v610, %v634
        %v637 = vadd.f32 %v559, %v635
        %v638 = vadd.f32 %v560, %v636
        %639 = vset.pattern.permute.xlu0 3
        %640 = vperm.xlu0 %639, %v391
        %v641 = vpop.permute.xlu0 %640
        %v643 = vlaneseq
        %v644 = vshrl.u32 %v643, 7
        %v645 = vsub.s32 3, %v644
        %v646 = vrot.slane %v295, %v645
        %v647 = vlaneseq
        %v648 = vshrl.u32 %v647, 7
        %v649 = vsub.s32 7, %v648
        %v650 = vrot.slane %v295, %v649
        %v653 = vlaneseq
        %v654 = vshrl.u32 %v653, 7
        %v655 = vsub.s32 3, %v654
        %v656 = vrot.slane %v646, %v655
        %v657 = vlaneseq
        %v658 = vshrl.u32 %v657, 7
        %v659 = vsub.s32 3, %v658
        %v660 = vrot.slane %v650, %v659
        %v661 = vmul.f32 %v641, %v656
        %v662 = vmul.f32 %v641, %v660
        %663 = vset.pattern.permute.xlu0 3
        %664 = vperm.xlu0 %663, %v392
        %v665 = vpop.permute.xlu0 %664
        %v667 = vlaneseq
        %v668 = vshrl.u32 %v667, 7
        %v669 = vsub.s32 3, %v668
        %v670 = vrot.slane %v390, %v669
        %v671 = vlaneseq
        %v672 = vshrl.u32 %v671, 7
        %v673 = vsub.s32 7, %v672
        %v674 = vrot.slane %v390, %v673
        %v677 = vlaneseq
        %v678 = vshrl.u32 %v677, 7
        %v679 = vsub.s32 3, %v678
        %v680 = vrot.slane %v670, %v679
        %v681 = vlaneseq
        %v682 = vshrl.u32 %v681, 7
        %v683 = vsub.s32 3, %v682
        %v684 = vrot.slane %v674, %v683
        %v685 = vmul.f32 %v665, %v680
        %v686 = vmul.f32 %v665, %v684
        %v687 = vadd.f32 %v661, %v685
        %v688 = vadd.f32 %v662, %v686
        %689 = vset.pattern.permute.xlu0 3
        %690 = vperm.xlu0 %689, %v393
        %v691 = vpop.permute.xlu0 %690
        %v693 = vlaneseq
        %v694 = vshrl.u32 %v693, 7
        %v695 = vsub.s32 3, %v694
        %v696 = vrot.slane %v341, %v695
        %v697 = vlaneseq
        %v698 = vshrl.u32 %v697, 7
        %v699 = vsub.s32 7, %v698
        %v700 = vrot.slane %v341, %v699
        %v703 = vlaneseq
        %v704 = vshrl.u32 %v703, 7
        %v705 = vsub.s32 3, %v704
        %v706 = vrot.slane %v696, %v705
        %v707 = vlaneseq
        %v708 = vshrl.u32 %v707, 7
        %v709 = vsub.s32 3, %v708
        %v710 = vrot.slane %v700, %v709
        %v711 = vmul.f32 %v691, %v706
        %v712 = vmul.f32 %v691, %v710
        %v713 = vadd.f32 %v687, %v711
        %v714 = vadd.f32 %v688, %v712
        %v715 = vadd.f32 %v637, %v713
        %v716 = vadd.f32 %v638, %v714
        %v717 = vmul.f32 %v715, 0.2
        %v718 = vmul.f32 %v716, 0.2
        %v719 = vmax.f32 %v715, %v717
        %v720 = vmax.f32 %v716, %v718
        %v723 = vcombine.low %v719, %v720
        %725 = vst [vmem:[%s294] sm:$0xff] %v723
        %s726 = sand.u32 %s184, 1
        %s727 = scalar_lea.sflag [#allocation4], %s726
        %s728 = sand.u32 %s184, 1
        %s729 = smul.addr %s728, 8
        %s730 = scalar_lea.vmem [#allocation5], %s729
        // Predicated region
        $region53: #{tpu_custom_call.1} parent=47 // pred_check
          %p731 = pneg %p194
        $region54: #{tpu_custom_call.1} parent=47 // pred_check_branch
          %733 = sbr.rel (%p731) target = $region56
        $region55: #{tpu_custom_call.1} parent=47 // pred_region
          %s735 = ssub.s32 128, 128
          %736 = vsyncadd %s727, %s735
          %s737 = smul.addr %s24, 2
          %s738 = smul.addr %s737, 64
          %s739 = scalar_lea.hbm %s7, %s738
          %s741 = sshll.u32 %s730, 4
          %s742 = int_to_ptr.vmem [resolvable:$true] %s741
          %744 = dma.vmem_to_hbm [thread:$0]  %s742, 128, %s739, %s727
        $region56: #{tpu_custom_call.1} parent=47 // pred_fallthru
          _
      $region48: #{tpu_custom_call.1} parent=5 // pred_fallthru
        _
      %p745 = scmp.le.s32.totalorder 2, %s19
      // Predicated region
      $region57: #{tpu_custom_call.1} parent=5 // pred_check
        %p746 = pneg %p745
      $region58: #{tpu_custom_call.1} parent=5 // pred_check_branch
        %748 = sbr.rel (%p746) target = $region60
      $region59: #{tpu_custom_call.1} parent=5 // pred_region
        %s749 = ssub.s32 %s19, 2
        // Predicated region
        $region61: #{tpu_custom_call.1} parent=59 // pred_check
          %p750 = pneg %p200
        $region62: #{tpu_custom_call.1} parent=59 // pred_check_branch
          %752 = sbr.rel (%p750) target = $region64
        $region63: #{tpu_custom_call.1} parent=59 // pred_region
          %s753 = sand.u32 %s185, 1
          %s754 = scalar_lea.sflag [#allocation4], %s753
          %s755 = sand.u32 %s185, 1
          %s756 = smul.addr %s755, 8
          %s757 = scalar_lea.vmem [#allocation5], %s756
          %758 = dma.done %s754, 128
        $region64: #{tpu_custom_call.1} parent=59 // pred_fallthru
          _
      $region60: #{tpu_custom_call.1} parent=5 // pred_fallthru
        _
    $region6: #{tpu_custom_call.1} parent=1 // loop_footer
      %s23 = sadd.s32 1, %s19
    $region7: #{tpu_custom_call.1} parent=1 // loop_footer_branch
      %18 = sbr.rel target = $region3
    $region8: #{tpu_custom_call.1} parent=1 // loop_exit
      _
    %759 = vsyncpa [#allocation3], 1
    %s760 = scalar_lea.sflag [#allocation3], 1
    %761 = vsyncpa %s760, 1
    %762 = vsyncpa [#allocation4], 1
    %s763 = scalar_lea.sflag [#allocation4], 1
    %764 = vsyncpa %s763, 1

</llo_original>
